<compile_context>
chip_gen: v6e
topology: v6e:2x2x1
jax: 0.10.0
libtpu: 0.0.40
codegen_flags: <defaults>
</compile_context>

<pallas_src>
import jax
import jax.numpy as jnp
from jax.experimental import pallas as pl
from jax.experimental.pallas import tpu as pltpu


def _round_up(x, m):
    return ((x + m - 1) // m) * m


_VMEM_REQUEST_CAP = 48 << 20    # total VMEM request cap (safe on v7x 64 MiB)
_VMEM_TILE_BUDGET = 32 << 20    # budget for a kernel's tile working set


def _pick_tb(B):
    # Batch tile for kernel 1: multiple of 8 (sublane-friendly) or full batch.
    # For B >= 16 this automatically yields >= 2 parallel tiles (v7x dual TC).
    if B >= 8 and B % 8 == 0:
        return 8
    return B


def _pick_ts(S, tb, H, h_bytes):
    # Seq tile: largest 8-aligned divisor whose working set (double-buffered
    # bf16 input block + in-kernel f32 |h| temp) fits the tile budget.
    if S % 8 != 0:
        return S
    fallback = S
    for cand in (512, 256, 128, 64, 32, 16, 8):
        if S % cand == 0:
            fallback = cand
            need = tb * cand * H * (2 * h_bytes + 4)
            if need <= _VMEM_TILE_BUDGET:
                return cand
    return fallback


def _pick_att_tb(B, H):
    # Kernel-2 batch tile: bound the (double-buffered out block + t/|t| temps)
    # working set; prefer >= 2 tiles when B allows (v7x dual TensorCore).
    cands = [c for c in (64, 32, 16, 8) if B % c == 0 and B // c >= 2]
    for c in cands:
        ws = 4 * c * B * H * 4 + 2 * (B + c) * H * 4
        if ws <= _VMEM_TILE_BUDGET:
            return c
    if cands:
        return cands[-1]
    return B


# --------------------------------------------------------------------------
# Kernel 1: streamed |h| sum/min reduction over the sequence axis.
# bf16 DMA of the [tb, ts, H] block; f32 math and f32 VMEM accumulators.
# --------------------------------------------------------------------------
def tadbert_stream_kernel(h_ref, s_ref, m_ref, s_acc, m_acc):
    k = pl.program_id(1)

    @pl.when(k == 0)
    def _init():
        s_acc[...] = jnp.zeros_like(s_acc)
        m_acc[...] = jnp.full_like(m_acc, jnp.inf)

    ha = jnp.abs(h_ref[...].astype(jnp.float32))                  # [tb, ts, H]
    s_acc[...] += jnp.sum(ha, axis=1)                             # [tb, H]
    m_acc[...] = jnp.minimum(m_acc[...], jnp.min(ha, axis=1))     # [tb, H]

    @pl.when(k == pl.num_programs(1) - 1)
    def _finalize():
        s_ref[...] = s_acc[...]
        m_ref[...] = m_acc[...]


# --------------------------------------------------------------------------
# Kernel 2: BertPooler (tanh(Linear(cls))) + three dense heads fused into one
# lane-dense matmul over ALL CLS rows at once.  bf16 operands, f32 accum.
# --------------------------------------------------------------------------
def tadbert_pooler_heads_kernel(cls_ref, wp_ref, bp_ref, wc_ref, bc_ref,
                                logits_ref):
    cls = cls_ref[...].astype(jnp.bfloat16)                       # [B, H]
    pooled = jnp.tanh(
        jnp.dot(cls, wp_ref[...], preferred_element_type=jnp.float32)
        + bp_ref[...])                                            # [B, H] f32
    logits_ref[...] = (
        jnp.dot(pooled.astype(jnp.bfloat16), wc_ref[...],
                preferred_element_type=jnp.float32)
        + bc_ref[...])                                            # [B, Np] f32


# --------------------------------------------------------------------------
# Kernel 3: att_score with torch's exact [B,H]-[B,1,H] -> [B,B,H] broadcast,
# L1-normalized over dim=1 via EUP reciprocal + multiply.
# --------------------------------------------------------------------------
def tadbert_att_kernel(s_ref, m_ref, att_ref):
    s = s_ref[...]                                    # [B,   H] sums, all rows
    m = m_ref[...]                                    # [tb2, H] mins, this tile
    t = s[None, :, :] - m[:, None, :]                 # [tb2, B, H]
    denom = jnp.maximum(jnp.sum(jnp.abs(t), axis=1, keepdims=True), 1e-12)
    att_ref[...] = t * pl.reciprocal(denom, approx=True)


# --------------------------------------------------------------------------
# Wrapper
# --------------------------------------------------------------------------
def tadbert_heads(last_hidden_state, params):
    B, S, H = last_hidden_state.shape
    C = params["w1"].shape[1]
    A = params["w2"].shape[1]
    Nout = 2 * C + A
    Np = _round_up(Nout, 128)                 # lane-dense fused head output
    h_bytes = jnp.dtype(last_hidden_state.dtype).itemsize
    f32 = 4

    # ---- head weights (tiny; only the fused output dim is padded) ----------
    wp = params["wp"].astype(jnp.bfloat16)                            # [H, H]
    bp = params["bp"].astype(jnp.float32)                             # [1, H]
    wcat = jnp.concatenate([params["w1"], params["w2"], params["w3"]], axis=1)
    bcat = jnp.concatenate([params["b1"], params["b2"], params["b3"]], axis=1)
    wcat = jnp.pad(wcat, ((0, 0), (0, Np - Nout))).astype(jnp.bfloat16)
    bcat = jnp.pad(bcat, ((0, 0), (0, Np - Nout))).astype(jnp.float32)

    # ---- tile plan ----------------------------------------------------------
    tb = _pick_tb(B)
    assert B % tb == 0
    ts = _pick_ts(S, tb, H, h_bytes)
    assert S % ts == 0
    nb, ns = B // tb, S // ts
    tb2 = _pick_att_tb(B, H)
    assert B % tb2 == 0
    nb2 = B // tb2

    # ---- explicit VMEM budgets (double-buffered blocks + temps + headroom) --
    vmem1 = (2 * tb * ts * H * h_bytes        # double-buffered h blocks
             + tb * ts * H * f32              # in-kernel f32 |h| temp
             + 4 * tb * H * f32               # double-buffered s/m out blocks
             + 2 * tb * H * f32)              # s_acc / m_acc scratch
    vmem1 = min(vmem1 + (8 << 20), _VMEM_REQUEST_CAP)
    vmem2 = (2 * (B + tb2) * H * f32          # s / m input blocks
             + 2 * tb2 * B * H * f32          # double-buffered att out block
             + 2 * tb2 * B * H * f32)         # t / |t| temps
    vmem2 = min(vmem2 + (8 << 20), _VMEM_REQUEST_CAP)

    cost_stream = pl.CostEstimate(
        flops=int(3 * B * S * H),
        transcendentals=0,
        bytes_accessed=int(h_bytes * B * S * H + 2 * f32 * B * H))
    cost_heads = pl.CostEstimate(
        flops=int(2 * B * H * H + 2 * B * H * Np),
        transcendentals=int(B * H),
        bytes_accessed=int(h_bytes * B * H + 2 * H * (H + Np)
                           + f32 * (H + Np + B * Np)))
    cost_att = pl.CostEstimate(
        flops=int(4 * B * B * H),
        transcendentals=int(B * H),
        bytes_accessed=int(f32 * (2 * B * H + B * B * H)))

    # ---- kernel 1: streamed |h| sum/min over seq (native-dtype stream) ------
    s_sum, h_min = pl.pallas_call(
        tadbert_stream_kernel,
        out_shape=(
            jax.ShapeDtypeStruct((B, H), jnp.float32),
            jax.ShapeDtypeStruct((B, H), jnp.float32),
        ),
        grid_spec=pltpu.PrefetchScalarGridSpec(
            num_scalar_prefetch=0,
            grid=(nb, ns),
            in_specs=[pl.BlockSpec((tb, ts, H), lambda i, k: (i, k, 0))],
            out_specs=[
                pl.BlockSpec((tb, H), lambda i, k: (i, 0)),
                pl.BlockSpec((tb, H), lambda i, k: (i, 0)),
            ],
            scratch_shapes=[pltpu.VMEM((tb, H), jnp.float32),
                            pltpu.VMEM((tb, H), jnp.float32)],
        ),
        compiler_params=pltpu.CompilerParams(
            dimension_semantics=("parallel", "arbitrary"),
            vmem_limit_bytes=vmem1),
        cost_estimate=cost_stream,
    )(last_hidden_state)

    # ---- kernel 2: pooler + fused dense heads over all CLS rows -------------
    cls = last_hidden_state[:, 0, :]                                  # [B, H]
    logits_p = pl.pallas_call(
        tadbert_pooler_heads_kernel,
        out_shape=jax.ShapeDtypeStruct((B, Np), jnp.float32),
        grid_spec=pltpu.PrefetchScalarGridSpec(
            num_scalar_prefetch=0,
            grid=(1,),
            in_specs=[
                pl.BlockSpec((B, H), lambda i: (0, 0)),
                pl.BlockSpec((H, H), lambda i: (0, 0)),
                pl.BlockSpec((1, H), lambda i: (0, 0)),
                pl.BlockSpec((H, Np), lambda i: (0, 0)),
                pl.BlockSpec((1, Np), lambda i: (0, 0)),
            ],
            out_specs=pl.BlockSpec((B, Np), lambda i: (0, 0)),
        ),
        compiler_params=pltpu.CompilerParams(
            dimension_semantics=("arbitrary",)),
        cost_estimate=cost_heads,
    )(cls, wp, bp, wcat, bcat)

    # ---- kernel 3: att_score, batch-tiled / parallel, unpadded lane dim -----
    att = pl.pallas_call(
        tadbert_att_kernel,
        out_shape=jax.ShapeDtypeStruct((B, B, H), jnp.float32),
        grid_spec=pltpu.PrefetchScalarGridSpec(
            num_scalar_prefetch=0,
            grid=(nb2,),
            in_specs=[
                pl.BlockSpec((B, H), lambda i: (0, 0)),        # all-batch sums
                pl.BlockSpec((tb2, H), lambda i: (i, 0)),      # this tile's mins
            ],
            out_specs=pl.BlockSpec((tb2, B, H), lambda i: (i, 0, 0)),
        ),
        compiler_params=pltpu.CompilerParams(
            dimension_semantics=("parallel",),
            vmem_limit_bytes=vmem2),
        cost_estimate=cost_att,
    )(s_sum, h_min)

    # ---- slice fused/padded logits back to module shapes --------------------
    sent = logits_p[:, :C]
    adv = logits_p[:, C:C + A]
    advtr = logits_p[:, C + A:C + A + C]
    return sent, adv, advtr, att


# --------------------------------------------------------------------------
# Toy BERT stand-in + params + reference
# --------------------------------------------------------------------------
def toy_bert_last_hidden_state(text_indices, word_emb, pos_emb, ln_g, ln_b):
    # Deterministic stand-in for bert(text_indices)['last_hidden_state'].
    x = word_emb[text_indices] + pos_emb[None, : text_indices.shape[1], :]
    mu = jnp.mean(x, axis=-1, keepdims=True)
    var = jnp.var(x, axis=-1, keepdims=True)
    y = (x - mu) / jnp.sqrt(var + 1e-12) * ln_g + ln_b
    # TPU backbones emit bf16 activations; the heads stream this dtype as-is
    # (no wrapper-side f32 upcast copy -> half the HBM read in kernel 1).
    return y.astype(jnp.bfloat16)


def init_params(key, hidden_dim, class_dim, adv_det_dim, vocab, max_seq):
    ks = jax.random.split(key, 12)
    scale = 0.05
    return {
        # BertPooler
        "wp": scale * jax.random.normal(ks[0], (hidden_dim, hidden_dim), jnp.float32),
        "bp": scale * jax.random.normal(ks[1], (1, hidden_dim), jnp.float32),
        # dense1 (class_dim), dense2 (adv_det_dim), dense3 (class_dim)
        "w1": scale * jax.random.normal(ks[2], (hidden_dim, class_dim), jnp.float32),
        "b1": scale * jax.random.normal(ks[3], (1, class_dim), jnp.float32),
        "w2": scale * jax.random.normal(ks[4], (hidden_dim, adv_det_dim), jnp.float32),
        "b2": scale * jax.random.normal(ks[5], (1, adv_det_dim), jnp.float32),
        "w3": scale * jax.random.normal(ks[6], (hidden_dim, class_dim), jnp.float32),
        "b3": scale * jax.random.normal(ks[7], (1, class_dim), jnp.float32),
        # toy BERT stand-in
        "word_emb": jax.random.normal(ks[8], (vocab, hidden_dim), jnp.float32),
        "pos_emb": jax.random.normal(ks[9], (max_seq, hidden_dim), jnp.float32),
        "ln_g": 1.0 + 0.1 * jax.random.normal(ks[10], (hidden_dim,), jnp.float32),
        "ln_b": 0.1 * jax.random.normal(ks[11], (hidden_dim,), jnp.float32),
    }


def reference(last_hidden_state, p):
    h = last_hidden_state.astype(jnp.float32)
    cls = h[:, 0, :]
    pooled = jnp.tanh(cls @ p["wp"] + p["bp"])
    sent = pooled @ p["w1"] + p["b1"]
    adv = pooled @ p["w2"] + p["b2"]
    advtr = pooled @ p["w3"] + p["b3"]
    ha = jnp.abs(h)
    t = jnp.sum(ha, axis=1) - jnp.min(ha, axis=1, keepdims=True)    # [B,B,H]
    att = t / jnp.maximum(jnp.sum(jnp.abs(t), axis=1, keepdims=True), 1e-12)
    return sent, adv, advtr, att


if __name__ == "__main__":
    B, S, H = 2, 8, 32
    CLASS_DIM, ADV_DET_DIM = 3, 2
    VOCAB, MAX_SEQ = 50, 16

    key = jax.random.PRNGKey(0)
    k_idx, k_par = jax.random.split(key)
    text_indices = jax.random.randint(k_idx, (B, S), 0, VOCAB)
    params = init_params(k_par, H, CLASS_DIM, ADV_DET_DIM, VOCAB, MAX_SEQ)

    last_hidden_state = toy_bert_last_hidden_state(
        text_indices, params["word_emb"], params["pos_emb"],
        params["ln_g"], params["ln_b"])

    sent_logits, advdet_logits, adv_tr_logits, att_score = jax.block_until_ready(
        tadbert_heads(last_hidden_state, params))

    # sanity check against a plain-JAX reference built from the same bf16
    # hidden state (bf16 MXU matmuls + approx reciprocal stay well inside tol)
    refs = reference(last_hidden_state, params)
    outs = (sent_logits, advdet_logits, adv_tr_logits, att_score)
    for o, r in zip(outs, refs):
        assert o.shape == r.shape and o.dtype == r.dtype
        assert jnp.max(jnp.abs(o - r)) < 2e-2, jnp.max(jnp.abs(o - r))

    assert sent_logits.shape == (B, CLASS_DIM)
    assert advdet_logits.shape == (B, ADV_DET_DIM)
    assert adv_tr_logits.shape == (B, CLASS_DIM)
    assert att_score.shape == (B, B, H)  # torch broadcast of [B,H]-[B,1,H]
    print("KERNEL_OK")
</pallas_src>

<mosaic_0001>
module attributes {stable_mosaic.version = 11 : i64} {
  func.func @tadbert_stream_kernel(%arg0: i32, %arg1: i32, %arg2: memref<2x8x32xbf16, #tpu.memory_space<vmem>>, %arg3: memref<2x32xf32, #tpu.memory_space<vmem>>, %arg4: memref<2x32xf32, #tpu.memory_space<vmem>>, %arg5: memref<2x32xf32, #tpu.memory_space<vmem>>, %arg6: memref<2x32xf32, #tpu.memory_space<vmem>>) attributes {dimension_semantics = [#tpu.dimension_semantics<parallel>, #tpu.dimension_semantics<arbitrary>], iteration_bounds = array<i64: 1, 1>, scalar_prefetch = 0 : i64, scratch_operands = 2 : i64, tpu.core_type = #tpu.core_type<tc>, window_params = [{transform_indices = @transform_0, window_bounds = array<i64: 2, 8, 32>}, {transform_indices = @transform_1, window_bounds = array<i64: 2, 32>}, {transform_indices = @transform_2, window_bounds = array<i64: 2, 32>}]} {
    %c0_i32 = arith.constant 0 : i32
    %0 = arith.cmpi eq, %arg1, %c0_i32 : i32
    %1 = arith.extui %0 : i1 to i32
    %c0_i32_0 = arith.constant 0 : i32
    %2 = arith.cmpi ne, %1, %c0_i32_0 : i32
    scf.if %2 {
      %cst_14 = arith.constant 0.000000e+00 : f32
      %17 = vector.broadcast %cst_14 : f32 to vector<2x32xf32>
      %c0_15 = arith.constant 0 : index
      %c0_16 = arith.constant 0 : index
      %18 = vector.load %arg5[%c0_15, %c0_16] : memref<2x32xf32, #tpu.memory_space<vmem>>, vector<2x32xf32>
      tpu.vector_store %arg5[%c0_15, %c0_16], %17 {strides = array<i32>} : memref<2x32xf32, #tpu.memory_space<vmem>>, vector<2x32xf32>,
      %cst_17 = arith.constant 0x7F800000 : f32
      %19 = vector.broadcast %cst_17 : f32 to vector<2x32xf32>
      %c0_18 = arith.constant 0 : index
      %c0_19 = arith.constant 0 : index
      %20 = vector.load %arg6[%c0_18, %c0_19] : memref<2x32xf32, #tpu.memory_space<vmem>>, vector<2x32xf32>
      tpu.vector_store %arg6[%c0_18, %c0_19], %19 {strides = array<i32>} : memref<2x32xf32, #tpu.memory_space<vmem>>, vector<2x32xf32>,
    } else {
    }
    %c0 = arith.constant 0 : index
    %c0_1 = arith.constant 0 : index
    %c0_2 = arith.constant 0 : index
    %3 = vector.load %arg2[%c0, %c0_1, %c0_2] : memref<2x8x32xbf16, #tpu.memory_space<vmem>>, vector<2x8x32xbf16>
    %4 = arith.extf %3 : vector<2x8x32xbf16> to vector<2x8x32xf32>
    %5 = math.absf %4 : vector<2x8x32xf32>
    %c0_3 = arith.constant 0 : index
    %c0_4 = arith.constant 0 : index
    %6 = vector.load %arg5[%c0_3, %c0_4] : memref<2x32xf32, #tpu.memory_space<vmem>>, vector<2x32xf32>
    %cst = arith.constant dense<0.000000e+00> : vector<2x32xf32>
    %7 = vector.multi_reduction <add>, %5, %cst [1] : vector<2x8x32xf32> to vector<2x32xf32>
    %8 = arith.addf %6, %7 : vector<2x32xf32>
    %c0_5 = arith.constant 0 : index
    %c0_6 = arith.constant 0 : index
    %9 = vector.load %arg5[%c0_5, %c0_6] : memref<2x32xf32, #tpu.memory_space<vmem>>, vector<2x32xf32>
    tpu.vector_store %arg5[%c0_5, %c0_6], %8 {strides = array<i32>} : memref<2x32xf32, #tpu.memory_space<vmem>>, vector<2x32xf32>,
    %c0_7 = arith.constant 0 : index
    %c0_8 = arith.constant 0 : index
    %10 = vector.load %arg6[%c0_7, %c0_8] : memref<2x32xf32, #tpu.memory_space<vmem>>, vector<2x32xf32>
    %cst_9 = arith.constant dense<0x7F800000> : vector<2x32xf32>
    %11 = vector.multi_reduction <minimumf>, %5, %cst_9 [1] : vector<2x8x32xf32> to vector<2x32xf32>
    %12 = arith.minimumf %10, %11 : vector<2x32xf32>
    %c0_10 = arith.constant 0 : index
    %c0_11 = arith.constant 0 : index
    %13 = vector.load %arg6[%c0_10, %c0_11] : memref<2x32xf32, #tpu.memory_space<vmem>>, vector<2x32xf32>
    tpu.vector_store %arg6[%c0_10, %c0_11], %12 {strides = array<i32>} : memref<2x32xf32, #tpu.memory_space<vmem>>, vector<2x32xf32>,
    %c0_i32_12 = arith.constant 0 : i32
    %14 = arith.cmpi eq, %arg1, %c0_i32_12 : i32
    %15 = arith.extui %14 : i1 to i32
    %c0_i32_13 = arith.constant 0 : i32
    %16 = arith.cmpi ne, %15, %c0_i32_13 : i32
    scf.if %16 {
      %c0_14 = arith.constant 0 : index
      %c0_15 = arith.constant 0 : index
      %17 = vector.load %arg5[%c0_14, %c0_15] : memref<2x32xf32, #tpu.memory_space<vmem>>, vector<2x32xf32>
      %c0_16 = arith.constant 0 : index
      %c0_17 = arith.constant 0 : index
      %18 = vector.load %arg3[%c0_16, %c0_17] : memref<2x32xf32, #tpu.memory_space<vmem>>, vector<2x32xf32>
      tpu.vector_store %arg3[%c0_16, %c0_17], %17 {strides = array<i32>} : memref<2x32xf32, #tpu.memory_space<vmem>>, vector<2x32xf32>,
      %c0_18 = arith.constant 0 : index
      %c0_19 = arith.constant 0 : index
      %19 = vector.load %arg6[%c0_18, %c0_19] : memref<2x32xf32, #tpu.memory_space<vmem>>, vector<2x32xf32>
      %c0_20 = arith.constant 0 : index
      %c0_21 = arith.constant 0 : index
      %20 = vector.load %arg4[%c0_20, %c0_21] : memref<2x32xf32, #tpu.memory_space<vmem>>, vector<2x32xf32>
      tpu.vector_store %arg4[%c0_20, %c0_21], %19 {strides = array<i32>} : memref<2x32xf32, #tpu.memory_space<vmem>>, vector<2x32xf32>,
    } else {
    }
    return
  }
  func.func @transform_0(%arg0: i32, %arg1: i32) -> (i32, i32, i32) {
    %c0_i32 = arith.constant 0 : i32
    %c0_i32_0 = arith.constant 0 : i32
    return %arg0, %arg1, %c0_i32 : i32, i32, i32
  }
  func.func @transform_1(%arg0: i32, %arg1: i32) -> (i32, i32) {
    %c0_i32 = arith.constant 0 : i32
    %c0_i32_0 = arith.constant 0 : i32
    return %arg0, %c0_i32 : i32, i32
  }
  func.func @transform_2(%arg0: i32, %arg1: i32) -> (i32, i32) {
    %c0_i32 = arith.constant 0 : i32
    %c0_i32_0 = arith.constant 0 : i32
    return %arg0, %c0_i32 : i32, i32
  }
}

</mosaic_0001>

<llo_original>
// kernel: tpu_custom_call.1
$region0: #{tpu_custom_call.1}
  #allocation0 [shape = 'u32[]', space=smem, size = 0x4, offset = 0x4, fixed_abs, tag = 'smem constant byte address 0x4 - core index']
  #allocation1 [shape = 'u32[144,128]{1,0:T(1,128)}', space=vmem, size = 0x12000, scoped, tag = 'internal scratch']
  #allocation2 [shape = 'f32[2,32]{1,0:T(2,128)}', space=vmem, size = 0x400, scoped, tag = 'scratch operand']
  #allocation3 [shape = 'f32[2,32]{1,0:T(2,128)}', space=vmem, size = 0x400, scoped, tag = 'scratch operand']
  %s0 = inlined_call_operand.hbm [shape: bf16[2,8,32], index: 0, kind: input, shape index: {}]
  %s1 = inlined_call_operand.hbm [shape: f32[2,32], index: 1, kind: output, shape index: {0}]
  %s2 = inlined_call_operand.hbm [shape: f32[2,32], index: 2, kind: output, shape index: {1}]
  %3 = xla_tuple %s1, %s2
  %s4 = sld [smem:[#allocation0]]
  $region34: #{tpu_custom_call.1} parent=0
    _
  %s6 = ssub.s32 1, %s4
  %s7 = scalar_select 0, %s6, %s4
  $region1: #{tpu_custom_call.1} parent=0
    #allocation4 [shape = 'u8[4096]{0}', space=vmem, size = 0x1000, scoped, tag = 'input window, operand 0, single buffered']
    #allocation5 [shape = 's32[1]{0}', space=sflag, size = 0x4, scoped, tag = 'scoped memory for tpu_custom_call.1']
    #allocation6 [shape = 's32[1]{0}', space=sflag, size = 0x4, scoped, tag = 'scoped memory for tpu_custom_call.1']
    #allocation7 [shape = 'u8[1024]{0}', space=vmem, size = 0x400, scoped, tag = 'output window, operand 0, single buffered']
    #allocation8 [shape = 'u8[1024]{0}', space=vmem, size = 0x400, scoped, tag = 'output window, operand 1, single buffered']
    #allocation9 [shape = 's32[1]{0}', space=sflag, size = 0x4, scoped, tag = 'scoped memory for tpu_custom_call.1']
    %8 = vsyncpa [#allocation5], 0
    %9 = vsyncpa [#allocation6], 0
    %10 = vsyncpa [#allocation9], 0
    // Predicated region
    $region2: #{tpu_custom_call.1} parent=1 // pred_check
      _
    $region3: #{tpu_custom_call.1} parent=1 // pred_check_branch
      %12 = sbr.rel (0) target = $region5
    $region4: #{tpu_custom_call.1} parent=1 // pred_region
      %s14 = ssub.s32 128, 128
      %15 = vsyncadd [#allocation5], %s14
      %s16 = sshll.u32 [#allocation4], 4
      %s17 = int_to_ptr.vmem [resolvable:$true] %s16
      %22 = dma.hbm_to_vmem [thread:$0]  %s0, 128, %s17, [#allocation5], 64, 64, 4
    $region5: #{tpu_custom_call.1} parent=1 // pred_fallthru
      _
    // Predicated region
    $region6: #{tpu_custom_call.1} parent=1 // pred_check
      _
    $region7: #{tpu_custom_call.1} parent=1 // pred_check_branch
      %24 = sbr.rel (0) target = $region9
    $region8: #{tpu_custom_call.1} parent=1 // pred_region
      %25 = dma.done [#allocation5], 128
    $region9: #{tpu_custom_call.1} parent=1 // pred_fallthru
      _
    %p26 = scmp.eq.s32.totalorder 0, 0
    // Predicated region
    $region10: #{tpu_custom_call.1} parent=1 // pred_check
      %p27 = pneg %p26
    $region11: #{tpu_custom_call.1} parent=1 // pred_check_branch
      %29 = sbr.rel (%p27) target = $region13
    $region12: #{tpu_custom_call.1} parent=1 // pred_region
      %vm30 = vcmask 254976
      %31 = vst.msk [vmem:[#allocation2] sm:$0x3] %vm30, 0.0
      %32 = vst.msk [vmem:[#allocation3] sm:$0x3] %vm30, inf
    $region13: #{tpu_custom_call.1} parent=1 // pred_fallthru
      _
    %v33 = vld [vmem:[#allocation4] sm:$0xf]
    %v34 = vld [vmem:[#allocation4 + $0x4] sm:$0xf]
    %v35 = vunpack.c.l.bf16 %v33
    %v36 = vunpack.c.l.bf16 %v34
    %v37 = vand.u32 2147483647, %v35
    %v38 = vand.u32 2147483647, %v36
    %v39 = vld [vmem:[#allocation2] sm:$0x3]
    %vm40 = vcmask 261120
    %v41 = vsel %vm40, %v37, 0.0
    %v42 = vrot.slane %v41, 4
    %v43 = vadd.f32 %v41, %v42
    %v44 = vrot.slane %v43, 2
    %v45 = vadd.f32 %v43, %v44
    %v46 = vrot.slane %v45, 1
    %v47 = vadd.f32 %v45, %v46
    %v48 = vsel %vm40, %v38, 0.0
    %v49 = vrot.slane %v48, 4
    %v50 = vadd.f32 %v48, %v49
    %v51 = vrot.slane %v50, 2
    %v52 = vadd.f32 %v50, %v51
    %v53 = vrot.slane %v52, 1
    %v54 = vadd.f32 %v52, %v53
    %vm57 = vcmask 1041409
    %v58 = vsel %vm57, %v54, %v47
    %v60 = vadd.f32 %v39, %v58
    %vm61 = vcmask 254976
    %62 = vst.msk [vmem:[#allocation2] sm:$0x3] %vm61, %v60
    %v63 = vld [vmem:[#allocation3] sm:$0x3]
    %v64 = vsel %vm40, %v37, inf
    %v65 = vrot.slane %v64, 4
    %v66 = vmin.f32 %v64, %v65
    %v67 = vrot.slane %v66, 2
    %v68 = vmin.f32 %v66, %v67
    %v69 = vrot.slane %v68, 1
    %v70 = vmin.f32 %v68, %v69
    %v71 = vsel %vm40, %v38, inf
    %v72 = vrot.slane %v71, 4
    %v73 = vmin.f32 %v71, %v72
    %v74 = vrot.slane %v73, 2
    %v75 = vmin.f32 %v73, %v74
    %v76 = vrot.slane %v75, 1
    %v77 = vmin.f32 %v75, %v76
    %v80 = vsel %vm57, %v77, %v70
    %v82 = vmin.f32 %v63, %v80
    %83 = vst.msk [vmem:[#allocation3] sm:$0x3] %vm61, %v82
    // Predicated region
    $region14: #{tpu_custom_call.1} parent=1 // pred_check
      %p84 = pneg %p26
    $region15: #{tpu_custom_call.1} parent=1 // pred_check_branch
      %86 = sbr.rel (%p84) target = $region17
    $region16: #{tpu_custom_call.1} parent=1 // pred_region
      %v87 = vld [vmem:[#allocation2] sm:$0x3]
      %88 = vst.msk [vmem:[#allocation7] sm:$0x3] %vm61, %v87
      %v89 = vld [vmem:[#allocation3] sm:$0x3]
      %90 = vst.msk [vmem:[#allocation8] sm:$0x3] %vm61, %v89
    $region17: #{tpu_custom_call.1} parent=1 // pred_fallthru
      _
    // Predicated region
    $region18: #{tpu_custom_call.1} parent=1 // pred_check
      _
    $region19: #{tpu_custom_call.1} parent=1 // pred_check_branch
      %92 = sbr.rel (0) target = $region21
    $region20: #{tpu_custom_call.1} parent=1 // pred_region
      %s94 = ssub.s32 32, 32
      %95 = vsyncadd [#allocation6], %s94
      %s97 = sshll.u32 [#allocation7], 4
      %s98 = int_to_ptr.vmem [resolvable:$true] %s97
      %100 = dma.vmem_to_hbm [thread:$0]  %s98, 32, %s1, [#allocation6]
    $region21: #{tpu_custom_call.1} parent=1 // pred_fallthru
      _
    // Predicated region
    $region22: #{tpu_custom_call.1} parent=1 // pred_check
      _
    $region23: #{tpu_custom_call.1} parent=1 // pred_check_branch
      %102 = sbr.rel (0) target = $region25
    $region24: #{tpu_custom_call.1} parent=1 // pred_region
      %s104 = ssub.s32 32, 32
      %105 = vsyncadd [#allocation9], %s104
      %s107 = sshll.u32 [#allocation8], 4
      %s108 = int_to_ptr.vmem [resolvable:$true] %s107
      %110 = dma.vmem_to_hbm [thread:$0]  %s108, 32, %s2, [#allocation9]
    $region25: #{tpu_custom_call.1} parent=1 // pred_fallthru
      _
    // Predicated region
    $region26: #{tpu_custom_call.1} parent=1 // pred_check
      _
    $region27: #{tpu_custom_call.1} parent=1 // pred_check_branch
      %112 = sbr.rel (0) target = $region29
    $region28: #{tpu_custom_call.1} parent=1 // pred_region
      %113 = dma.done [#allocation6], 32
    $region29: #{tpu_custom_call.1} parent=1 // pred_fallthru
      _
    // Predicated region
    $region30: #{tpu_custom_call.1} parent=1 // pred_check
      _
    $region31: #{tpu_custom_call.1} parent=1 // pred_check_branch
      %115 = sbr.rel (0) target = $region33
    $region32: #{tpu_custom_call.1} parent=1 // pred_region
      %116 = dma.done [#allocation9], 32
    $region33: #{tpu_custom_call.1} parent=1 // pred_fallthru
      _
    %117 = vsyncpa [#allocation5], 1
    %118 = vsyncpa [#allocation6], 1
    %119 = vsyncpa [#allocation9], 1

</llo_original>
